<compile_context>
chip_gen: v7x
topology: tpu7x:2x2x1
jax: 0.10.0
libtpu: 0.0.40
codegen_flags: <defaults>
</compile_context>

<pallas_src>
import jax
import jax.numpy as jnp
from jax.experimental import pallas as pl
from jax.experimental.pallas import tpu as pltpu


def _solu_kernel(x_ref, o_ref):
    x = x_ref[...]
    o_ref[...] = (x * jnp.exp(x)).astype(o_ref.dtype)


def solu(x: jax.Array, *, target_block_bytes: int = 2 * 1024 * 1024,
         max_width: int = 2048) -> jax.Array:
    """Apply SoLU (x * exp(x)) elementwise with a Pallas TPU kernel."""
    orig_shape = x.shape
    dtype = x.dtype
    n = x.size
    if n == 0:
        return x
    itemsize = jnp.dtype(dtype).itemsize

    # Lane-dense width: largest power-of-two multiple of 128 dividing n.
    width = 0
    w = 128
    while w <= max_width and n % w == 0:
        width = w
        w *= 2

    pad = 0
    if width == 0:
        # Ragged total size: pad once to a multiple of 128 (rare fallback).
        width = 128
        pad = (-n) % width

    x_flat = jnp.reshape(x, (-1,))
    if pad:
        x_flat = jnp.pad(x_flat, (0, pad))  # zero pad: 0*exp(0)=0, sliced off below
    total = n + pad
    rows = total // width
    x2d = jnp.reshape(x_flat, (rows, width))

    # dtype-aware sublane multiple: f32 -> 8, bf16/f16 -> 16, int8/fp8 -> 32.
    sublane = max(8, 32 // itemsize)
    tile_rows = max(sublane,
                    (target_block_bytes // (width * itemsize)) // sublane * sublane)
    if rows <= tile_rows:
        # Full-extent row block (always a legal block shape, even if rows < 8).
        tile_rows = rows
        grid = (1,)
    else:
        # Ragged tail handled in-kernel via a partial boundary block.
        grid = (pl.cdiv(rows, tile_rows),)

    out2d = pl.pallas_call(
        _solu_kernel,
        out_shape=jax.ShapeDtypeStruct((rows, width), dtype),
        grid_spec=pltpu.PrefetchScalarGridSpec(
            num_scalar_prefetch=0,
            grid=grid,
            in_specs=[pl.BlockSpec((tile_rows, width), lambda i: (i, 0))],
            out_specs=pl.BlockSpec((tile_rows, width), lambda i: (i, 0)),
        ),
        compiler_params=pltpu.CompilerParams(
            dimension_semantics=("parallel",),
        ),
        cost_estimate=pl.CostEstimate(
            flops=n, transcendentals=n, bytes_accessed=2 * n * itemsize),
    )(x2d)

    if pad:
        out_flat = jnp.reshape(out2d, (-1,))[:n]
        return jnp.reshape(out_flat, orig_shape)
    return jnp.reshape(out2d, orig_shape)


if __name__ == "__main__":
    key = jax.random.PRNGKey(0)

    # Typical NCHW-like input (matches the PyTorch forward): fast path, no pad.
    x = jax.random.normal(key, (2, 4, 16, 16), dtype=jnp.float32)
    out = jax.block_until_ready(solu(x))
    ref = x * jnp.exp(x)
    assert out.shape == x.shape and out.dtype == x.dtype
    assert jnp.allclose(out, ref, atol=1e-6, rtol=1e-6)

    # Ragged size (n % 128 != 0): exercises the fallback pad path.
    key2 = jax.random.PRNGKey(0)
    x2 = jax.random.normal(key2, (3, 5, 7), dtype=jnp.float32)
    out2 = jax.block_until_ready(solu(x2))
    ref2 = x2 * jnp.exp(x2)
    assert out2.shape == x2.shape and out2.dtype == x2.dtype
    assert jnp.allclose(out2, ref2, atol=1e-6, rtol=1e-6)

    print("KERNEL_OK")
</pallas_src>

<mosaic_0001>
module attributes {stable_mosaic.version = 11 : i64} {
  func.func @_solu_kernel(%arg0: i32, %arg1: memref<1x2048xf32, #tpu.memory_space<vmem>>, %arg2: memref<1x2048xf32, #tpu.memory_space<vmem>>) attributes {dimension_semantics = [#tpu.dimension_semantics<parallel>], iteration_bounds = array<i64: 1>, scalar_prefetch = 0 : i64, scratch_operands = 0 : i64, tpu.core_type = #tpu.core_type<tc>, window_params = [{transform_indices = @transform_0, window_bounds = array<i64: 1, 2048>}, {transform_indices = @transform_1, window_bounds = array<i64: 1, 2048>}]} {
    %c0 = arith.constant 0 : index
    %c0_0 = arith.constant 0 : index
    %0 = vector.load %arg1[%c0, %c0_0] : memref<1x2048xf32, #tpu.memory_space<vmem>>, vector<1x2048xf32>
    %1 = math.exp %0 : vector<1x2048xf32>
    %2 = arith.mulf %0, %1 : vector<1x2048xf32>
    %c0_1 = arith.constant 0 : index
    %c0_2 = arith.constant 0 : index
    %3 = vector.load %arg2[%c0_1, %c0_2] : memref<1x2048xf32, #tpu.memory_space<vmem>>, vector<1x2048xf32>
    tpu.vector_store %arg2[%c0_1, %c0_2], %2 {strides = array<i32>} : memref<1x2048xf32, #tpu.memory_space<vmem>>, vector<1x2048xf32>,
    return
  }
  func.func @transform_0(%arg0: i32) -> (i32, i32) {
    %c0_i32 = arith.constant 0 : i32
    %c0_i32_0 = arith.constant 0 : i32
    return %arg0, %c0_i32 : i32, i32
  }
  func.func @transform_1(%arg0: i32) -> (i32, i32) {
    %c0_i32 = arith.constant 0 : i32
    %c0_i32_0 = arith.constant 0 : i32
    return %arg0, %c0_i32 : i32, i32
  }
}

</mosaic_0001>

<llo_original>
// kernel: tpu_custom_call.1
$region0: #{tpu_custom_call.1}
  #allocation0 [shape = 'u32[]', space=smem, size = 0x4, offset = 0x4, fixed_abs, tag = 'smem constant byte address 0x4 - core index']
  #allocation1 [shape = 'u32[144,128]{1,0:T(1,128)}', space=vmem, size = 0x12000, scoped, tag = 'internal scratch']
  %s0 = inlined_call_operand.hbm [shape: f32[1,2048], index: 0, kind: input, shape index: {}]
  %s1 = inlined_call_operand.hbm [shape: f32[1,2048], index: 1, kind: output, shape index: {}]
  %s2 = sld [smem:[#allocation0]]
  $region18: #{tpu_custom_call.1} parent=0
    _
  %s4 = ssub.s32 1, %s2
  %s5 = scalar_select 0, %s4, %s2
  $region1: #{tpu_custom_call.1} parent=0
    #allocation2 [shape = 'u8[8192]{0}', space=vmem, size = 0x2000, scoped, tag = 'input window, operand 0, single buffered']
    #allocation3 [shape = 's32[1]{0}', space=sflag, size = 0x4, scoped, tag = 'scoped memory for tpu_custom_call.1']
    #allocation4 [shape = 's32[1]{0}', space=sflag, size = 0x4, scoped, tag = 'scoped memory for tpu_custom_call.1']
    #allocation5 [shape = 'u8[8192]{0}', space=vmem, size = 0x2000, scoped, tag = 'output window, operand 0, single buffered']
    %6 = vsyncpa [#allocation3], 0
    %7 = vsyncpa [#allocation4], 0
    // Predicated region
    $region2: #{tpu_custom_call.1} parent=1 // pred_check
      _
    $region3: #{tpu_custom_call.1} parent=1 // pred_check_branch
      %9 = sbr.rel (0) target = $region5
    $region4: #{tpu_custom_call.1} parent=1 // pred_region
      %s11 = ssub.s32 256, 256
      %12 = vsyncadd [#allocation3], %s11
      %s14 = sshll.u32 [#allocation2], 4
      %s15 = int_to_ptr.vmem [resolvable:$true] %s14
      %17 = dma.hbm_to_vmem [thread:$0]  %s0, 256, %s15, [#allocation3]
    $region5: #{tpu_custom_call.1} parent=1 // pred_fallthru
      _
    // Predicated region
    $region6: #{tpu_custom_call.1} parent=1 // pred_check
      _
    $region7: #{tpu_custom_call.1} parent=1 // pred_check_branch
      %19 = sbr.rel (0) target = $region9
    $region8: #{tpu_custom_call.1} parent=1 // pred_region
      %20 = dma.done [#allocation3], 256
    $region9: #{tpu_custom_call.1} parent=1 // pred_fallthru
      _
    %v21 = vld [vmem:[#allocation2] sm:$0xff]
    %v22 = vld [vmem:[#allocation2 + $0x8] sm:$0xff]
    %v23 = vmul.f32 %v21, 1.442695
    %v24 = vpow.pop %v23
    %v25 = vmul.f32 %v22, 1.442695
    %v26 = vpow.pop %v25
    %v27 = vmul.f32 %v21, %v24
    %v28 = vmul.f32 %v22, %v26
    %29 = vst [vmem:[#allocation5] sm:$0xff] %v27
    %30 = vst [vmem:[#allocation5 + $0x8] sm:$0xff] %v28
    // Predicated region
    $region10: #{tpu_custom_call.1} parent=1 // pred_check
      _
    $region11: #{tpu_custom_call.1} parent=1 // pred_check_branch
      %32 = sbr.rel (0) target = $region13
    $region12: #{tpu_custom_call.1} parent=1 // pred_region
      %s34 = ssub.s32 256, 256
      %35 = vsyncadd [#allocation4], %s34
      %s37 = sshll.u32 [#allocation5], 4
      %s38 = int_to_ptr.vmem [resolvable:$true] %s37
      %40 = dma.vmem_to_hbm [thread:$0]  %s38, 256, %s1, [#allocation4]
    $region13: #{tpu_custom_call.1} parent=1 // pred_fallthru
      _
    // Predicated region
    $region14: #{tpu_custom_call.1} parent=1 // pred_check
      _
    $region15: #{tpu_custom_call.1} parent=1 // pred_check_branch
      %42 = sbr.rel (0) target = $region17
    $region16: #{tpu_custom_call.1} parent=1 // pred_region
      %43 = dma.done [#allocation4], 256
    $region17: #{tpu_custom_call.1} parent=1 // pred_fallthru
      _
    %44 = vsyncpa [#allocation3], 1
    %45 = vsyncpa [#allocation4], 1

</llo_original>
